<compile_context>
chip_gen: v7x
topology: tpu7x:2x2x1
jax: 0.10.0
libtpu: 0.0.40
codegen_flags: <defaults>
</compile_context>

<pallas_src>
import jax
import jax.numpy as jnp
from jax.experimental import pallas as pl
from jax.experimental.pallas import tpu as pltpu


def _make_cam_kernel(use_cache):
    def cam_kernel(gamma_ref, x_ref, o_ref, e_ref, a_ref, *cache):
        # grid = (B, 2, NT): batch ("parallel"), phase ("arbitrary"), tile.
        xc_ref = cache[0] if use_cache else None
        phase = pl.program_id(1)
        t = pl.program_id(2)
        last_t = pl.num_programs(2) - 1

        # ---------------- phase 0: energy accumulation ----------------------
        @pl.when(phase == 0)
        def _accumulate():
            xt32 = x_ref[0]                                  # (C, tile_n) f32
            if use_cache:
                xc_ref[t] = xt32                             # persist for phase 1
            xt = xt32.astype(jnp.bfloat16)                   # MXU operand
            part = jax.lax.dot_general(
                xt, xt,
                dimension_numbers=(((1,), (1,)), ((), ())),  # X @ X^T over N
                preferred_element_type=jnp.float32)

            # First tile writes the accumulator (saves zero store + read-add).
            @pl.when(t == 0)
            def _init():
                e_ref[...] = part

            @pl.when(t > 0)
            def _acc():
                e_ref[...] += part

        # Last phase-0 step: softmax(rowmax(E)-E) == softmax(-E); one row-min
        # reduction; gamma folded into the bf16 attention operand.
        @pl.when((phase == 0) & (t == last_t))
        def _softmax():
            energy = e_ref[...]
            e_min = jnp.min(energy, axis=-1, keepdims=True)
            p = jnp.exp(e_min - energy)
            denom = jnp.sum(p, axis=-1, keepdims=True)
            # EUP approx reciprocal + one Newton step (~1e-7 rel), off the VALU.
            r = pl.reciprocal(denom, approx=True)
            r = r * (2.0 - denom * r)
            gamma = gamma_ref[0]                             # SMEM scalar
            a_ref[...] = (p * (r * gamma)).astype(a_ref.dtype)

        # ---------------- phase 1: out = (gamma*A) @ X + X ------------------
        @pl.when(phase == 1)
        def _apply():
            if use_cache:
                xt32 = xc_ref[t]          # f32 from VMEM cache, no HBM re-read
            else:
                xt32 = x_ref[0]           # f32, streamed (reverse tile order)
            out = jnp.dot(a_ref[...], xt32.astype(jnp.bfloat16),
                          preferred_element_type=jnp.float32)
            # Residual add in f32: gamma == 0 returns x exactly.
            o_ref[0] = (out + xt32).astype(o_ref.dtype)

    return cam_kernel


def _vmem_capacity_bytes():
    """Generation-aware VMEM capacity (v5e/v6e 128 MiB, v7x 64 MiB per TC)."""
    try:
        cap = getattr(pltpu.get_tpu_info(), "vmem_capacity_bytes", None)
        if cap:
            return int(cap)
    except Exception:
        pass
    return 64 << 20   # conservative fallback (v7x per-TensorCore)


def _bytes_needed(C, N, tile_n, use_cache):
    io = 4 * C * tile_n * 4              # double-buffered f32 in + out tiles
    scratch = C * C * 4 + C * C * 2      # energy (f32) + attention (bf16)
    cache = C * N * 4 if use_cache else 0
    return io + scratch + cache


def _plan(C, N, tile_n=None):
    """Pick (tile_n, use_cache) under ~70% of this generation's VMEM."""
    budget = int(_vmem_capacity_bytes() * 0.70)
    if tile_n is not None:
        cands = [tile_n if N % tile_n == 0 else N]
    else:
        cands = [t for t in range(128, N + 1, 128) if N % t == 0] or [N]
    for cached in (True, False):
        fit = [t for t in cands if _bytes_needed(C, N, t, cached) <= budget]
        if fit:
            return max(fit), cached
    # Nothing fits the budget: smallest tile, streaming path, best effort.
    return min(cands), False


def cam_module(x, gamma, *, tile_n=None, use_cache=None):
    """x: (B, C, H, W) float32; gamma: (1,) float32. Returns (B, C, H, W)."""
    B, C, H, W = x.shape
    N = H * W
    x_flat = x.reshape(B, C, N)

    plan_tile, plan_cache = _plan(C, N, tile_n)
    tile_n = plan_tile
    if use_cache is None:
        use_cache = plan_cache
    nt = N // tile_n

    cap = _vmem_capacity_bytes()
    need = _bytes_needed(C, N, tile_n, use_cache)
    vmem_limit = max(32 << 20, min(need + (8 << 20), int(cap * 0.95)))

    if use_cache:
        # Phase 1 reads X from the VMEM cache; pin its input block index to
        # the one phase 0 fetched last so Pallas never re-DMAs X from HBM.
        in_map = lambda b, p, t, g: (b, 0, t * (1 - p) + (nt - 1) * p)
        # Phase 0 pins the (never-written) output index to block 0, which is
        # also phase 1's first written block -> no garbage block is flushed;
        # phase 1 then visits/writes each tile exactly once.
        out_map = lambda b, p, t, g: (b, 0, t * p)
        scratch = [
            pltpu.VMEM((C, C), jnp.float32),          # energy accumulator
            pltpu.VMEM((C, C), jnp.bfloat16),         # gamma-folded attention
            pltpu.VMEM((nt, C, tile_n), jnp.float32)  # X cache (f32: exact residual)
        ]
    else:
        # Streaming fallback: phase 1 traverses tiles in reverse so its first
        # block equals phase 0's last block and that X DMA is elided.
        in_map = lambda b, p, t, g: (b, 0, t * (1 - p) + (nt - 1 - t) * p)
        # Phase 0 pins the (never-written) output index to block nt-1, which
        # is phase 1's first written block -> no garbage flush at transition.
        out_map = lambda b, p, t, g: (b, 0, (nt - 1) * (1 - p) + (nt - 1 - t) * p)
        scratch = [
            pltpu.VMEM((C, C), jnp.float32),
            pltpu.VMEM((C, C), jnp.bfloat16),
        ]

    out_flat = pl.pallas_call(
        _make_cam_kernel(use_cache),
        out_shape=jax.ShapeDtypeStruct((B, C, N), x.dtype),
        grid_spec=pltpu.PrefetchScalarGridSpec(
            num_scalar_prefetch=1,            # gamma -> SMEM before the grid
            grid=(B, 2, nt),                  # batch, phase, spatial tile
            in_specs=[pl.BlockSpec((1, C, tile_n), in_map)],
            out_specs=pl.BlockSpec((1, C, tile_n), out_map),
            scratch_shapes=scratch,
        ),
        compiler_params=pltpu.CompilerParams(
            # Batch feeds megacore; phase/tile carry per-batch scratch so they
            # must stay "arbitrary" on one core.  NOTE: with B == 1 on v7x
            # (2 TCs/chip) one core idles; splitting phase 1 into its own
            # pallas_call would recover it (not done here).
            dimension_semantics=("parallel", "arbitrary", "arbitrary"),
            vmem_limit_bytes=vmem_limit,
        ),
    )(gamma, x_flat)

    return out_flat.reshape(B, C, H, W)


def cam_reference(x, gamma, mxu_dtype=jnp.float32):
    """Pure-JAX reference mirroring the PyTorch forward.

    mxu_dtype=jnp.bfloat16 mirrors the kernel's MXU numerics (bf16 operands,
    f32 accumulation) for tolerance-matched validation.
    """
    B, C, H, W = x.shape
    xf = x.reshape(B, C, H * W)
    xq = xf.astype(mxu_dtype)
    energy = jnp.einsum("bcn,bdn->bcd", xq, xq,
                        preferred_element_type=jnp.float32)
    energy_new = jnp.max(energy, axis=-1, keepdims=True) - energy
    attention = jax.nn.softmax(energy_new, axis=-1)
    out = jnp.einsum("bcd,bdn->bcn", attention.astype(mxu_dtype), xq,
                     preferred_element_type=jnp.float32).reshape(B, C, H, W)
    return gamma[0] * out + x


if __name__ == "__main__":
    key = jax.random.PRNGKey(0)
    B, C, H, W = 2, 4, 16, 16
    x = jax.random.normal(key, (B, C, H, W), dtype=jnp.float32)

    # nn.Parameter(torch.zeros(1)) -> gamma initialized to 0; also exercise a
    # nonzero gamma so the attention path actually contributes.
    gamma_zero = jnp.zeros((1,), dtype=jnp.float32)
    gamma_test = jnp.array([0.5], dtype=jnp.float32)

    # Cached path (X kept in VMEM for phase 1): 2 tiles and 1 tile.
    out0 = jax.block_until_ready(cam_module(x, gamma_zero, tile_n=128))
    out1 = jax.block_until_ready(cam_module(x, gamma_test, tile_n=128))
    out1_one = jax.block_until_ready(cam_module(x, gamma_test, tile_n=256))

    # Streaming fallback (reverse-order phase 1, X re-read from HBM).
    out0_s = jax.block_until_ready(
        cam_module(x, gamma_zero, tile_n=128, use_cache=False))
    out1_s = jax.block_until_ready(
        cam_module(x, gamma_test, tile_n=128, use_cache=False))

    # gamma = 0: residual path must return x exactly (both paths).
    assert jnp.allclose(out0, x, atol=1e-6), "mismatch (gamma=0, cached)"
    assert jnp.allclose(out0_s, x, atol=1e-6), "mismatch (gamma=0, streaming)"

    # gamma = 0.5: compare against a reference mirroring the kernel's
    # bf16-operand / f32-accumulate MXU numerics.
    ref1 = cam_reference(x, gamma_test, mxu_dtype=jnp.bfloat16)
    assert jnp.allclose(out1, ref1, atol=2e-2, rtol=2e-2), "mismatch (cached, 2 tiles)"
    assert jnp.allclose(out1_one, ref1, atol=2e-2, rtol=2e-2), "mismatch (cached, 1 tile)"
    assert jnp.allclose(out1_s, ref1, atol=2e-2, rtol=2e-2), "mismatch (streaming)"

    # Tile-count and code-path invariance of the two-phase accumulation.
    assert jnp.allclose(out1, out1_one, atol=2e-2, rtol=2e-2), "tiling mismatch"
    assert jnp.allclose(out1, out1_s, atol=2e-2, rtol=2e-2), "path mismatch"

    print("KERNEL_OK")
</pallas_src>

<mosaic_0001>
module attributes {stable_mosaic.version = 11 : i64} {
  func.func @cam_kernel(%arg0: i32, %arg1: i32, %arg2: i32, %arg3: memref<1xf32, #tpu.memory_space<smem>>, %arg4: memref<1x4x128xf32, #tpu.memory_space<vmem>>, %arg5: memref<1x4x128xf32, #tpu.memory_space<vmem>>, %arg6: memref<4x4xf32, #tpu.memory_space<vmem>>, %arg7: memref<4x4xbf16, #tpu.memory_space<vmem>>, %arg8: memref<2x4x128xf32, #tpu.memory_space<vmem>>) attributes {dimension_semantics = [#tpu.dimension_semantics<parallel>, #tpu.dimension_semantics<arbitrary>, #tpu.dimension_semantics<arbitrary>], iteration_bounds = array<i64: 2, 2, 2>, scalar_prefetch = 1 : i64, scratch_operands = 3 : i64, tpu.core_type = #tpu.core_type<tc>, window_params = [{transform_indices = @transform_0, window_bounds = array<i64: 1, 4, 128>}, {transform_indices = @transform_1, window_bounds = array<i64: 1, 4, 128>}]} {
    %c0_i32 = arith.constant 0 : i32
    %0 = arith.cmpi eq, %arg1, %c0_i32 : i32
    %1 = arith.extui %0 : i1 to i32
    %c0_i32_0 = arith.constant 0 : i32
    %2 = arith.cmpi ne, %1, %c0_i32_0 : i32
    scf.if %2 {
      %c0 = arith.constant 0 : index
      %c0_5 = arith.constant 0 : index
      %c0_6 = arith.constant 0 : index
      %11 = vector.load %arg4[%c0, %c0_5, %c0_6] : memref<1x4x128xf32, #tpu.memory_space<vmem>>, vector<1x4x128xf32>
      %12 = vector.shape_cast %11 : vector<1x4x128xf32> to vector<4x128xf32>
      %13 = arith.index_cast %arg2 : i32 to index
      %c0_7 = arith.constant 0 : index
      %c0_8 = arith.constant 0 : index
      %14 = vector.load %arg8[%13, %c0_7, %c0_8] : memref<2x4x128xf32, #tpu.memory_space<vmem>>, vector<1x4x128xf32>
      %15 = vector.shape_cast %14 : vector<1x4x128xf32> to vector<4x128xf32>
      %16 = vector.shape_cast %12 : vector<4x128xf32> to vector<1x4x128xf32>
      tpu.vector_store %arg8[%13, %c0_7, %c0_8], %16 {strides = array<i32>} : memref<2x4x128xf32, #tpu.memory_space<vmem>>, vector<1x4x128xf32>,
      %17 = arith.truncf %12 : vector<4x128xf32> to vector<4x128xbf16>
      %cst = arith.constant dense<0.000000e+00> : vector<4x4xf32>
      %18 = tpu.matmul %17, %17, %cst {dimension_numbers = #tpu.dot_dimension_numbers<[1], [1], [0], [0], [0, 0, 1, 0], [], []>} : vector<4x128xbf16>, vector<4x128xbf16>, vector<4x4xf32> -> vector<4x4xf32>
      %c0_i32_9 = arith.constant 0 : i32
      %19 = arith.cmpi eq, %arg2, %c0_i32_9 : i32
      %20 = arith.extui %19 : i1 to i32
      %c0_i32_10 = arith.constant 0 : i32
      %21 = arith.cmpi ne, %20, %c0_i32_10 : i32
      scf.if %21 {
        %c0_13 = arith.constant 0 : index
        %c0_14 = arith.constant 0 : index
        %25 = vector.load %arg6[%c0_13, %c0_14] : memref<4x4xf32, #tpu.memory_space<vmem>>, vector<4x4xf32>
        tpu.vector_store %arg6[%c0_13, %c0_14], %18 {strides = array<i32>} : memref<4x4xf32, #tpu.memory_space<vmem>>, vector<4x4xf32>,
      } else {
      }
      %c0_i32_11 = arith.constant 0 : i32
      %22 = arith.cmpi sgt, %arg2, %c0_i32_11 : i32
      %23 = arith.extui %22 : i1 to i32
      %c0_i32_12 = arith.constant 0 : i32
      %24 = arith.cmpi ne, %23, %c0_i32_12 : i32
      scf.if %24 {
        %c0_13 = arith.constant 0 : index
        %c0_14 = arith.constant 0 : index
        %25 = vector.load %arg6[%c0_13, %c0_14] : memref<4x4xf32, #tpu.memory_space<vmem>>, vector<4x4xf32>
        %26 = arith.addf %25, %18 : vector<4x4xf32>
        %c0_15 = arith.constant 0 : index
        %c0_16 = arith.constant 0 : index
        %27 = vector.load %arg6[%c0_15, %c0_16] : memref<4x4xf32, #tpu.memory_space<vmem>>, vector<4x4xf32>
        tpu.vector_store %arg6[%c0_15, %c0_16], %26 {strides = array<i32>} : memref<4x4xf32, #tpu.memory_space<vmem>>, vector<4x4xf32>,
      } else {
      }
    } else {
    }
    %c0_i32_1 = arith.constant 0 : i32
    %3 = arith.cmpi eq, %arg1, %c0_i32_1 : i32
    %c1_i32 = arith.constant 1 : i32
    %4 = arith.cmpi eq, %arg2, %c1_i32 : i32
    %5 = arith.andi %3, %4 : i1
    %6 = arith.extui %5 : i1 to i32
    %c0_i32_2 = arith.constant 0 : i32
    %7 = arith.cmpi ne, %6, %c0_i32_2 : i32
    scf.if %7 {
      %c0 = arith.constant 0 : index
      %c0_5 = arith.constant 0 : index
      %11 = vector.load %arg6[%c0, %c0_5] : memref<4x4xf32, #tpu.memory_space<vmem>>, vector<4x4xf32>
      %cst = arith.constant dense<0x7F800000> : vector<4xf32>
      %12 = vector.multi_reduction <minimumf>, %11, %cst [1] : vector<4x4xf32> to vector<4xf32>
      %13 = vector.shape_cast %12 : vector<4xf32> to vector<4x1xf32>
      %14 = vector.broadcast %13 : vector<4x1xf32> to vector<4x4xf32>
      %15 = arith.subf %14, %11 : vector<4x4xf32>
      %16 = math.exp %15 : vector<4x4xf32>
      %cst_6 = arith.constant dense<0.000000e+00> : vector<4xf32>
      %17 = vector.multi_reduction <add>, %16, %cst_6 [1] : vector<4x4xf32> to vector<4xf32>
      %18 = vector.shape_cast %17 : vector<4xf32> to vector<4x1xf32>
      %19 = tpu.reciprocal %18 {approx = true} : vector<4x1xf32> -> vector<4x1xf32>
      %20 = arith.mulf %18, %19 : vector<4x1xf32>
      %cst_7 = arith.constant 2.000000e+00 : f32
      %21 = vector.broadcast %cst_7 : f32 to vector<4x1xf32>
      %22 = arith.subf %21, %20 : vector<4x1xf32>
      %23 = arith.mulf %19, %22 : vector<4x1xf32>
      %c0_8 = arith.constant 0 : index
      %24 = memref.load %arg3[%c0_8] : memref<1xf32, #tpu.memory_space<smem>>
      %25 = vector.broadcast %24 : f32 to vector<4x1xf32>
      %26 = arith.mulf %23, %25 : vector<4x1xf32>
      %27 = vector.broadcast %26 : vector<4x1xf32> to vector<4x4xf32>
      %28 = arith.mulf %16, %27 : vector<4x4xf32>
      %29 = arith.truncf %28 : vector<4x4xf32> to vector<4x4xbf16>
      %c0_9 = arith.constant 0 : index
      %c0_10 = arith.constant 0 : index
      %30 = vector.load %arg7[%c0_9, %c0_10] : memref<4x4xbf16, #tpu.memory_space<vmem>>, vector<4x4xbf16>
      tpu.vector_store %arg7[%c0_9, %c0_10], %29 {strides = array<i32>} : memref<4x4xbf16, #tpu.memory_space<vmem>>, vector<4x4xbf16>,
    } else {
    }
    %c1_i32_3 = arith.constant 1 : i32
    %8 = arith.cmpi eq, %arg1, %c1_i32_3 : i32
    %9 = arith.extui %8 : i1 to i32
    %c0_i32_4 = arith.constant 0 : i32
    %10 = arith.cmpi ne, %9, %c0_i32_4 : i32
    scf.if %10 {
      %11 = arith.index_cast %arg2 : i32 to index
      %c0 = arith.constant 0 : index
      %c0_5 = arith.constant 0 : index
      %12 = vector.load %arg8[%11, %c0, %c0_5] : memref<2x4x128xf32, #tpu.memory_space<vmem>>, vector<1x4x128xf32>
      %13 = vector.shape_cast %12 : vector<1x4x128xf32> to vector<4x128xf32>
      %c0_6 = arith.constant 0 : index
      %c0_7 = arith.constant 0 : index
      %14 = vector.load %arg7[%c0_6, %c0_7] : memref<4x4xbf16, #tpu.memory_space<vmem>>, vector<4x4xbf16>
      %15 = arith.truncf %13 : vector<4x128xf32> to vector<4x128xbf16>
      %cst = arith.constant dense<0.000000e+00> : vector<4x128xf32>
      %16 = tpu.matmul %14, %15, %cst {dimension_numbers = #tpu.dot_dimension_numbers<[1], [0], [0], [1], [0, 0, 1, 1], [], []>} : vector<4x4xbf16>, vector<4x128xbf16>, vector<4x128xf32> -> vector<4x128xf32>
      %17 = arith.addf %16, %13 : vector<4x128xf32>
      %c0_8 = arith.constant 0 : index
      %c0_9 = arith.constant 0 : index
      %c0_10 = arith.constant 0 : index
      %18 = vector.load %arg5[%c0_8, %c0_9, %c0_10] : memref<1x4x128xf32, #tpu.memory_space<vmem>>, vector<1x4x128xf32>
      %19 = vector.shape_cast %18 : vector<1x4x128xf32> to vector<4x128xf32>
      %20 = vector.shape_cast %17 : vector<4x128xf32> to vector<1x4x128xf32>
      tpu.vector_store %arg5[%c0_8, %c0_9, %c0_10], %20 {strides = array<i32>} : memref<1x4x128xf32, #tpu.memory_space<vmem>>, vector<1x4x128xf32>,
    } else {
    }
    return
  }
  func.func @transform_0(%arg0: i32, %arg1: i32, %arg2: i32, %arg3: memref<1xf32, #tpu.memory_space<smem>>) -> (i32, i32, i32) {
    %c1_i32 = arith.constant 1 : i32
    %0 = arith.subi %c1_i32, %arg1 : i32
    %1 = arith.muli %arg2, %0 : i32
    %c1_i32_0 = arith.constant 1 : i32
    %2 = arith.muli %c1_i32_0, %arg1 : i32
    %3 = arith.addi %1, %2 : i32
    %c0_i32 = arith.constant 0 : i32
    %c0_i32_1 = arith.constant 0 : i32
    return %arg0, %c0_i32, %3 : i32, i32, i32
  }
  func.func @transform_1(%arg0: i32, %arg1: i32, %arg2: i32, %arg3: memref<1xf32, #tpu.memory_space<smem>>) -> (i32, i32, i32) {
    %0 = arith.muli %arg2, %arg1 : i32
    %c0_i32 = arith.constant 0 : i32
    %c0_i32_0 = arith.constant 0 : i32
    return %arg0, %c0_i32, %0 : i32, i32, i32
  }
}

</mosaic_0001>

<llo_original>
// kernel: tpu_custom_call.1
$region0: #{tpu_custom_call.1}
  #allocation0 [shape = 'u32[]', space=smem, size = 0x4, offset = 0x4, fixed_abs, tag = 'smem constant byte address 0x4 - core index']
  #allocation1 [shape = 'u32[144,128]{1,0:T(1,128)}', space=vmem, size = 0x12000, scoped, tag = 'internal scratch']
  #allocation2 [shape = 'f32[4,4]{1,0:T(4,128)}', space=vmem, size = 0x800, scoped, tag = 'scratch operand']
  #allocation3 [shape = 'bf16[4,4]{1,0:T(4,128)(2,1)}', space=vmem, size = 0x400, scoped, tag = 'scratch operand']
  #allocation4 [shape = 'f32[2,4,128]{2,1,0:T(4,128)}', space=vmem, size = 0x1000, scoped, tag = 'scratch operand']
  #allocation5 [shape = 's32[1]{0}', space=sflag, size = 0x4, scoped, tag = 'scoped memory for tpu_custom_call.1']
  #allocation6 [shape = 'f32[1]{0:T(128)S(6)}', space=smem, size = 0x200, scoped, tag = 'prefetched SMEM operand 0']
  %s0 = inlined_call_operand.<no memory space> [shape: f32[1], index: 0, kind: input, shape index: {}]
  %s1 = inlined_call_operand.hbm [shape: f32[2,4,256], index: 1, kind: input, shape index: {}]
  %s2 = inlined_call_operand.hbm [shape: f32[2,4,256], index: 2, kind: output, shape index: {}]
  %s3 = sld [smem:[#allocation0]]
  $region61: #{tpu_custom_call.1} parent=0
    _
  %s5 = ssub.s32 1, %s3
  %s6 = scalar_select 0, %s5, %s3
  %7 = sst [smem:[#allocation6]] %s0
  $region1: #{tpu_custom_call.1} parent=0
    #allocation7 [shape = 'u8[4096]{0}', space=vmem, size = 0x1000, scoped, tag = 'input window, operand 1']
    #allocation8 [shape = 's32[2]{0}', space=sflag, size = 0x8, scoped, tag = 'scoped memory for tpu_custom_call.1']
    #allocation9 [shape = 's32[2]{0}', space=sflag, size = 0x8, scoped, tag = 'scoped memory for tpu_custom_call.1']
    #allocation10 [shape = 'u8[4096]{0}', space=vmem, size = 0x1000, scoped, tag = 'output window, operand 0']
    %8 = vsyncpa [#allocation8], 0
    %s9 = scalar_lea.sflag [#allocation8], 1
    %10 = vsyncpa %s9, 0
    %11 = vsyncpa [#allocation9], 0
    %s12 = scalar_lea.sflag [#allocation9], 1
    %13 = vsyncpa %s12, 0
    loop: start=0, step=1, limit=10
    $region2: #{tpu_custom_call.1} parent=1 // loop_pre_header
      _
    $region3: #{tpu_custom_call.1} parent=1 // loop_header
      %s15 = sphi 0, %s19
      %p16 = scmp.ge.s32.totalorder %s15, 10
      %s22 = sphi 0, %s41
      %s23 = sphi 0, %s37
      %s24 = sphi 0, %s33
      %s25 = sphi 0, %s22
      %s26 = sphi 0, %s23
      %s27 = sphi 0, %s24
      %s28 = sphi 0, %s25
      %s29 = sphi 0, %s26
      %s30 = sphi 0, %s27
      %s52 = sphi 0, %s54
      %s55 = sphi 0, %s52
      %s56 = sphi 0, %s55
      %s72 = sphi 0, %s56
      %s82 = sphi 0, %s84
      %s85 = sphi 0, %s82
      %s86 = sphi 0, %s85
      %s102 = sphi 0, %s86
    $region4: #{tpu_custom_call.1} parent=1 // loop_header_branch
      %18 = sbr.rel (%p16) target = $region8
    $region5: #{tpu_custom_call.1} parent=1 // loop_body
      %s20 = ssub.s32 %s15, 1
      %s21 = ssub.s32 %s15, 2
      %s31 = sadd.s32 1, %s24
      %p32 = scmp.ge.s32.totalorder %s31, 2
      %s33 = scalar_select %p32, 0, %s31
      %s34 = sadd.s32 1, %s23
      %s35 = scalar_select %p32, %s34, %s23
      %p36 = scmp.ge.s32.totalorder %s35, 2
      %s37 = scalar_select %p36, 0, %s35
      %s38 = sadd.s32 1, %s22
      %s39 = scalar_select %p36, %s38, %s22
      %p40 = scmp.ge.s32.totalorder %s39, 2
      %s41 = scalar_select %p40, 0, %s39
      %s42 = ssub.s32 1, %s23
      %s43 = smul.u32 %s24, %s42
      %s44 = sadd.s32 %s43, %s23
      %s45 = ssub.s32 1, %s37
      %s46 = smul.u32 %s33, %s45
      %s47 = sadd.s32 %s46, %s37
      %s48 = ssub.s32 %s22, %s41
      %s49 = ssub.s32 %s44, %s47
      %s50 = sor.u32 %s48, %s49
      %p51 = scmp.eq.s32.totalorder %s50, 0
      %s53 = sadd.s32 %s52, 1
      %s54 = scalar_select %p51, %s52, %s53
      %p57 = pneg %p51
      %p58 = scmp.eq.s32.totalorder %s15, 7
      %p59 = por %p57, %p58
      %p60 = scmp.ne.s32.totalorder %s52, %s55
      %p61 = scmp.eq.s32.totalorder %s15, 0
      %p62 = por %p60, %p61
      %p63 = scmp.ne.s32.totalorder %s52, %s55
      %p64 = scmp.eq.s32.totalorder %s20, 7
      %p65 = por %p63, %p64
      %p66 = scmp.ne.s32.totalorder %s55, %s56
      %p67 = scmp.eq.s32.totalorder %s20, 0
      %p68 = por %p66, %p67
      %p69 = scmp.ne.s32.totalorder %s55, %s56
      %p70 = scmp.eq.s32.totalorder %s21, 7
      %p71 = por %p69, %p70
      %p73 = scmp.ne.s32.totalorder %s56, %s72
      %p74 = scmp.eq.s32.totalorder %s21, 0
      %p75 = por %p73, %p74
      %s76 = smul.u32 %s24, %s23
      %s77 = smul.u32 %s33, %s37
      %s78 = ssub.s32 %s22, %s41
      %s79 = ssub.s32 %s76, %s77
      %s80 = sor.u32 %s78, %s79
      %p81 = scmp.eq.s32.totalorder %s80, 0
      %s83 = sadd.s32 %s82, 1
      %s84 = scalar_select %p81, %s82, %s83
      %p87 = pneg %p81
      %p88 = scmp.eq.s32.totalorder %s15, 7
      %p89 = por %p87, %p88
      %p90 = scmp.ne.s32.totalorder %s82, %s85
      %p91 = scmp.eq.s32.totalorder %s15, 0
      %p92 = por %p90, %p91
      %p93 = scmp.ne.s32.totalorder %s82, %s85
      %p94 = scmp.eq.s32.totalorder %s20, 7
      %p95 = por %p93, %p94
      %p96 = scmp.ne.s32.totalorder %s85, %s86
      %p97 = scmp.eq.s32.totalorder %s20, 0
      %p98 = por %p96, %p97
      %p99 = scmp.ne.s32.totalorder %s85, %s86
      %p100 = scmp.eq.s32.totalorder %s21, 7
      %p101 = por %p99, %p100
      %p103 = scmp.ne.s32.totalorder %s86, %s102
      %p104 = scmp.eq.s32.totalorder %s21, 0
      %p105 = por %p103, %p104
      %p106 = scmp.le.s32.totalorder 1, %s15
      %p107 = scmp.lt.s32.totalorder %s15, 9
      %p108 = pnand %p106, %p107
      %p109 = pneg %p108
      // Predicated region
      $region9: #{tpu_custom_call.1} parent=5 // pred_check
        _
      $region10: #{tpu_custom_call.1} parent=5 // pred_check_branch
        %111 = sbr.rel (%p108) target = $region12
      $region11: #{tpu_custom_call.1} parent=5 // pred_region
        %s112 = ssub.s32 %s15, 1
      $region12: #{tpu_custom_call.1} parent=5 // pred_fallthru
        _
      %p113 = scmp.lt.s32.totalorder %s15, 8
      // Predicated region
      $region13: #{tpu_custom_call.1} parent=5 // pred_check
        %p114 = pneg %p113
      $region14: #{tpu_custom_call.1} parent=5 // pred_check_branch
        %116 = sbr.rel (%p114) target = $region16
      $region15: #{tpu_custom_call.1} parent=5 // pred_region
        // Predicated region
        $region17: #{tpu_custom_call.1} parent=15 // pred_check
          %p117 = pneg %p62
        $region18: #{tpu_custom_call.1} parent=15 // pred_check_branch
          %119 = sbr.rel (%p117) target = $region20
        $region19: #{tpu_custom_call.1} parent=15 // pred_region
          %s120 = sand.u32 %s52, 1
          %s121 = scalar_lea.sflag [#allocation8], %s120
          %s122 = sand.u32 %s52, 1
          %s123 = smul.addr %s122, 4
          %s124 = scalar_lea.vmem [#allocation7], %s123
          %s125 = ssub.s32 1, %s23
          %s126 = smul.u32 %s24, %s125
          %s127 = sadd.s32 %s126, %s23
          %s129 = ssub.s32 64, 64
          %130 = vsyncadd %s121, %s129
          %s131 = smul.addr %s22, 2
          %s132 = sadd.s32 %s127, %s131
          %s133 = smul.addr %s132, 64
          %s134 = scalar_lea.hbm %s1, %s133
          %s136 = sshll.u32 %s124, 4
          %s137 = int_to_ptr.vmem [resolvable:$true] %s136
          %139 = dma.hbm_to_vmem [thread:$0]  %s134, 64, %s137, %s121
        $region20: #{tpu_custom_call.1} parent=15 // pred_fallthru
          _
      $region16: #{tpu_custom_call.1} parent=5 // pred_fallthru
        _
      %p140 = scmp.le.s32.totalorder 1, %s15
      %p141 = scmp.lt.s32.totalorder %s15, 9
      %p142 = pnand %p140, %p141
      %p143 = pneg %p142
      // Predicated region
      $region21: #{tpu_custom_call.1} parent=5 // pred_check
        _
      $region22: #{tpu_custom_call.1} parent=5 // pred_check_branch
        %145 = sbr.rel (%p142) target = $region24
      $region23: #{tpu_custom_call.1} parent=5 // pred_region
        %s146 = ssub.s32 %s15, 1
        %s147 = sand.u32 %s55, 1
        %s148 = scalar_lea.sflag [#allocation8], %s147
        %s149 = sand.u32 %s55, 1
        %s150 = smul.addr %s149, 4
        %s151 = scalar_lea.vmem [#allocation7], %s150
        // Predicated region
        $region25: #{tpu_custom_call.1} parent=23 // pred_check
          %p152 = pneg %p68
        $region26: #{tpu_custom_call.1} parent=23 // pred_check_branch
          %154 = sbr.rel (%p152) target = $region28
        $region27: #{tpu_custom_call.1} parent=23 // pred_region
          %155 = dma.done %s148, 64
        $region28: #{tpu_custom_call.1} parent=23 // pred_fallthru
          _
        %s156 = sand.u32 %s55, 1
        %s157 = scalar_lea.sflag [#allocation8], %s156
        %s158 = sand.u32 %s55, 1
        %s159 = smul.addr %s158, 4
        %s160 = scalar_lea.vmem [#allocation7], %s159
        %p161 = pneg %p68
        %p162 = pneg %p65
        %p163 = pneg %p98
        %p164 = pneg %p95
        %s165 = sand.u32 %s85, 1
        %s166 = scalar_lea.sflag [#allocation9], %s165
        %s167 = sand.u32 %s85, 1
        %s168 = smul.addr %s167, 4
        %s169 = scalar_lea.vmem [#allocation10], %s168
        %s170 = ssub.s32 1, %s26
        %s171 = smul.u32 %s27, %s170
        %s172 = sadd.s32 %s171, %s26
        %s173 = smul.u32 %s27, %s26
        %p175 = scmp.eq.s32.totalorder %s26, 0
        // Predicated region
        $region29: #{tpu_custom_call.1} parent=23 // pred_check
          %p176 = pneg %p175
        $region30: #{tpu_custom_call.1} parent=23 // pred_check_branch
          %178 = sbr.rel (%p176) target = $region32
        $region31: #{tpu_custom_call.1} parent=23 // pred_region
          %v179 = vld [vmem:[%s151] sm:$0xf]
          %s180 = smul.u32 %s27, 4
          %s181 = scalar_lea.vmem [#allocation4], %s180
          %182 = vst [vmem:[%s181] sm:$0xf] %v179
          %v183 = vpack.c.bf16 %v179, %v179
          %184 = vmatprep.subr.bf16.mxu0 0
          %185 = vmatpush1.bf16.xpose.msra.mxu0 %v183
          %186 = vmatprep.subr.bf16.mxu0 0
          %187 = vmatpush1.bf16.xpose.msra.mxu0 0
          %188 = vmatprep.subr.bf16.mxu0 0
          %189 = vmatpush1.bf16.xpose.msra.mxu0 0
          %190 = vmatprep.subr.bf16.mxu0 0
          %191 = vmatpush1.bf16.xpose.msra.mxu0 0
          %192 = vmatprep.subr.bf16.mxu0 0
          %193 = vmatpush1.bf16.xpose.msra.mxu0 0
          %194 = vmatprep.subr.bf16.mxu0 0
          %195 = vmatpush1.bf16.xpose.msra.mxu0 0
          %196 = vmatprep.subr.bf16.mxu0 0
          %197 = vmatpush1.bf16.xpose.msra.mxu0 0
          %198 = vmatprep.subr.bf16.mxu0 0
          %199 = vmatpush1.bf16.xpose.msra.mxu0 0
          %200 = vmatprep.subr.bf16.mxu0 0
          %201 = vmatpush1.bf16.xpose.msra.mxu0 0
          %202 = vmatprep.subr.bf16.mxu0 0
          %203 = vmatpush1.bf16.xpose.msra.mxu0 0
          %204 = vmatprep.subr.bf16.mxu0 0
          %205 = vmatpush1.bf16.xpose.msra.mxu0 0
          %206 = vmatprep.subr.bf16.mxu0 0
          %207 = vmatpush1.bf16.xpose.msra.mxu0 0
          %208 = vmatprep.subr.bf16.mxu0 0
          %209 = vmatpush1.bf16.xpose.msra.mxu0 0
          %210 = vmatprep.subr.bf16.mxu0 0
          %211 = vmatpush1.bf16.xpose.msra.mxu0 0
          %212 = vmatprep.subr.bf16.mxu0 0
          %213 = vmatpush1.bf16.xpose.msra.mxu0 0
          %214 = vmatprep.subr.bf16.mxu0 0
          %215 = vmatpush1.bf16.xpose.msra.mxu0 0
          %216 = vmatprep.mubr.bf16.mxu0 0
          %217 = vmatmul.mubr.bf16.gmra.mrb[0].mxu0 %v183
          %v218 = vpop.f32.mrb[0].mxu0
          %v219 = vadd.f32 0.0, %v218
          %v220 = vpop.f32.mrb[0].mxu0
          %v221 = vpop.f32.mrb[0].mxu0
          %v222 = vpop.f32.mrb[0].mxu0
          %223 = vdwg.mxu0
          %p224 = scmp.eq.s32.totalorder %s27, 0
          // Predicated region
          $region33: #{tpu_custom_call.1} parent=31 // pred_check
            %p225 = pneg %p224
          $region34: #{tpu_custom_call.1} parent=31 // pred_check_branch
            %227 = sbr.rel (%p225) target = $region36
          $region35: #{tpu_custom_call.1} parent=31 // pred_region
            %vm228 = vcmask 27648
            %229 = vst.msk [vmem:[#allocation2] sm:$0xf] %vm228, %v219
          $region36: #{tpu_custom_call.1} parent=31 // pred_fallthru
            _
          %p230 = scmp.gt.s32.totalorder %s27, 0
          // Predicated region
          $region37: #{tpu_custom_call.1} parent=31 // pred_check
            %p231 = pneg %p230
          $region38: #{tpu_custom_call.1} parent=31 // pred_check_branch
            %233 = sbr.rel (%p231) target = $region40
          $region39: #{tpu_custom_call.1} parent=31 // pred_region
            %v234 = vld [vmem:[#allocation2] sm:$0xf]
            %v235 = vadd.f32 %v234, %v219
            %vm236 = vcmask 27648
            %237 = vst.msk [vmem:[#allocation2] sm:$0xf] %vm236, %v235
          $region40: #{tpu_custom_call.1} parent=31 // pred_fallthru
            _
        $region32: #{tpu_custom_call.1} parent=23 // pred_fallthru
          _
        %p238 = scmp.eq.s32.totalorder %s27, 1
        %p239 = pnand %p175, %p238
        %p240 = pneg %p239
        // Predicated region
        $region41: #{tpu_custom_call.1} parent=23 // pred_check
          _
        $region42: #{tpu_custom_call.1} parent=23 // pred_check_branch
          %242 = sbr.rel (%p239) target = $region44
        $region43: #{tpu_custom_call.1} parent=23 // pred_region
          %v243 = vld [vmem:[#allocation2] sm:$0xf]
          %vm244 = vcmask 27648
          %v245 = vsel %vm244, %v243, inf
          %246 = vmin.xlane.f32.xlu0 %v245
          %v247 = vpop.xlane.xlu0 %246
          %v248 = vsub.f32 %v247, %v243
          %v249 = vmul.f32 %v248, 1.442695
          %v250 = vpow.pop %v249
          %v251 = vsel %vm244, %v250, 0.0
          %252 = vadd.xlane.f32.xlu0 %v251
          %v253 = vpop.xlane.xlu0 %252
          %v254 = vrcp.pop %v253
          %v255 = vmul.f32 %v253, %v254
          %v256 = vsub.f32 2.0, %v255
          %v257 = vmul.f32 %v254, %v256
          %s258 = sld [smem:[#allocation6]]
          %v259 = vstv %s258
          %v260 = vmul.f32 %v257, %v259
          %v261 = vmul.f32 %v250, %v260
          %v262 = vpack.c.bf16 %v261, %v261
          %vm263 = vcmask 25600
          %264 = vst.msk [vmem:[#allocation3] sm:$0x3] %vm263, %v262
        $region44: #{tpu_custom_call.1} parent=23 // pred_fallthru
          _
        %p265 = scmp.eq.s32.totalorder %s26, 1
        // Predicated region
        $region45: #{tpu_custom_call.1} parent=23 // pred_check
          %p266 = pneg %p265
        $region46: #{tpu_custom_call.1} parent=23 // pred_check_branch
          %268 = sbr.rel (%p266) target = $region48
        $region47: #{tpu_custom_call.1} parent=23 // pred_region
          %s269 = smul.u32 %s27, 4
          %s270 = scalar_lea.vmem [#allocation4], %s269
          %v271 = vld [vmem:[%s270] sm:$0xf]
          %v272 = vld [vmem:[#allocation3] sm:$0x3]
          %v273 = vpack.c.bf16 %v271, %v271
          %vm274 = vcmask 31744
          %v276 = vsel %vm274, %v272, 0
          %vm278 = vcmask 1041408
          %v280 = vsel %vm278, %v273, 0
          %282 = vmatprep.subr.bf16.mxu0 0
          %283 = vmatpush1.bf16.msra.mxu0 %v280
          %284 = vmatprep.subr.bf16.mxu0 0
          %285 = vmatpush1.bf16.msra.mxu0 0
          %286 = vmatprep.subr.bf16.mxu0 0
          %287 = vmatpush1.bf16.msra.mxu0 0
          %288 = vmatprep.subr.bf16.mxu0 0
          %289 = vmatpush1.bf16.msra.mxu0 0
          %290 = vmatprep.subr.bf16.mxu0 0
          %291 = vmatpush1.bf16.msra.mxu0 0
          %292 = vmatprep.subr.bf16.mxu0 0
          %293 = vmatpush1.bf16.msra.mxu0 0
          %294 = vmatprep.subr.bf16.mxu0 0
          %295 = vmatpush1.bf16.msra.mxu0 0
          %296 = vmatprep.subr.bf16.mxu0 0
          %297 = vmatpush1.bf16.msra.mxu0 0
          %298 = vmatprep.subr.bf16.mxu0 0
          %299 = vmatpush1.bf16.msra.mxu0 0
          %300 = vmatprep.subr.bf16.mxu0 0
          %301 = vmatpush1.bf16.msra.mxu0 0
          %302 = vmatprep.subr.bf16.mxu0 0
          %303 = vmatpush1.bf16.msra.mxu0 0
          %304 = vmatprep.subr.bf16.mxu0 0
          %305 = vmatpush1.bf16.msra.mxu0 0
          %306 = vmatprep.subr.bf16.mxu0 0
          %307 = vmatpush1.bf16.msra.mxu0 0
          %308 = vmatprep.subr.bf16.mxu0 0
          %309 = vmatpush1.bf16.msra.mxu0 0
          %310 = vmatprep.subr.bf16.mxu0 0
          %311 = vmatpush1.bf16.msra.mxu0 0
          %312 = vmatprep.subr.bf16.mxu0 0
          %313 = vmatpush1.bf16.msra.mxu0 0
          %314 = vmatprep.mubr.bf16.mxu0 0
          %315 = vmatmul.mubr.bf16.gmra.mrb[0].mxu0 %v276
          %v316 = vpop.f32.mrb[0].mxu0
          %v317 = vadd.f32 %v271, %v316
          %v318 = vpop.f32.mrb[0].mxu0
          %v319 = vpop.f32.mrb[0].mxu0
          %v320 = vpop.f32.mrb[0].mxu0
          %321 = vdwg.mxu0
          %322 = vst [vmem:[%s169] sm:$0xf] %v317
        $region48: #{tpu_custom_call.1} parent=23 // pred_fallthru
          _
        %s323 = sand.u32 %s85, 1
        %s324 = scalar_lea.sflag [#allocation9], %s323
        %s325 = sand.u32 %s85, 1
        %s326 = smul.addr %s325, 4
        %s327 = scalar_lea.vmem [#allocation10], %s326
        // Predicated region
        $region49: #{tpu_custom_call.1} parent=23 // pred_check
          %p328 = pneg %p95
        $region50: #{tpu_custom_call.1} parent=23 // pred_check_branch
          %330 = sbr.rel (%p328) target = $region52
        $region51: #{tpu_custom_call.1} parent=23 // pred_region
          %s331 = smul.u32 %s27, %s26
          %s333 = ssub.s32 64, 64
          %334 = vsyncadd %s324, %s333
          %s335 = smul.addr %s25, 2
          %s336 = sadd.s32 %s331, %s335
          %s337 = smul.addr %s336, 64
          %s338 = scalar_lea.hbm %s2, %s337
          %s340 = sshll.u32 %s327, 4
          %s341 = int_to_ptr.vmem [resolvable:$true] %s340
          %343 = dma.vmem_to_hbm [thread:$0]  %s341, 64, %s338, %s324
        $region52: #{tpu_custom_call.1} parent=23 // pred_fallthru
          _
      $region24: #{tpu_custom_call.1} parent=5 // pred_fallthru
        _
      %p344 = scmp.le.s32.totalorder 2, %s15
      // Predicated region
      $region53: #{tpu_custom_call.1} parent=5 // pred_check
        %p345 = pneg %p344
      $region54: #{tpu_custom_call.1} parent=5 // pred_check_branch
        %347 = sbr.rel (%p345) target = $region56
      $region55: #{tpu_custom_call.1} parent=5 // pred_region
        %s348 = ssub.s32 %s15, 2
        // Predicated region
        $region57: #{tpu_custom_call.1} parent=55 // pred_check
          %p349 = pneg %p101
        $region58: #{tpu_custom_call.1} parent=55 // pred_check_branch
          %351 = sbr.rel (%p349) target = $region60
        $region59: #{tpu_custom_call.1} parent=55 // pred_region
          %s352 = sand.u32 %s86, 1
          %s353 = scalar_lea.sflag [#allocation9], %s352
          %s354 = sand.u32 %s86, 1
          %s355 = smul.addr %s354, 4
          %s356 = scalar_lea.vmem [#allocation10], %s355
          %357 = dma.done %s353, 64
        $region60: #{tpu_custom_call.1} parent=55 // pred_fallthru
          _
      $region56: #{tpu_custom_call.1} parent=5 // pred_fallthru
        _
    $region6: #{tpu_custom_call.1} parent=1 // loop_footer
      %s19 = sadd.s32 1, %s15
    $region7: #{tpu_custom_call.1} parent=1 // loop_footer_branch
      %14 = sbr.rel target = $region3
    $region8: #{tpu_custom_call.1} parent=1 // loop_exit
      _
    %358 = vsyncpa [#allocation8], 1
    %s359 = scalar_lea.sflag [#allocation8], 1
    %360 = vsyncpa %s359, 1
    %361 = vsyncpa [#allocation9], 1
    %s362 = scalar_lea.sflag [#allocation9], 1
    %363 = vsyncpa %s362, 1

</llo_original>
